<compile_context>
chip_gen: v6e
topology: v6e:2x2x1
jax: 0.10.0
libtpu: 0.0.40
codegen_flags: <defaults>
</compile_context>

<pallas_src>
import jax
import jax.numpy as jnp
from jax.experimental import pallas as pl
from jax.experimental.pallas import tpu as pltpu


EMB_DIM = 128   # embedding width expected by nn.Linear(128, 3)
OUT_DIM = 3     # real head width
PAD_OUT = 128   # lane-dense padded head width


def _round_up(a, m):
    return (a + m - 1) // m * m


def _resgcnv2_kernel(x_ref, w1_ref, b1_ref, w2_ref, b2_ref,
                     out_ref, emb_ref, pool_ref):
    """Grid = (batch tiles, HW tiles). HW is the reduction (inner) axis."""
    k = pl.program_id(1)

    @pl.when(k == 0)
    def _init():
        pool_ref[...] = jnp.zeros_like(pool_ref)

    # Partial sum over this HW tile. x is zero-padded along HW in the wrapper
    # and 1/HW is folded into w1, so a plain sum is exact (no mask needed).
    x = x_ref[...].astype(jnp.float32)              # (TB, C, THW), bf16 -> f32
    pool_ref[...] += jnp.sum(x, axis=-1)            # (TB, C)

    @pl.when(k == pl.num_programs(1) - 1)
    def _finalize():
        # Synthetic previous_model tail: Linear(C, 128) + ReLU (w1 pre-scaled
        # by 1/HW so pool_ref holds the sum, not the mean).
        emb = jnp.dot(pool_ref[...], w1_ref[...],
                      preferred_element_type=jnp.float32) + b1_ref[...]
        emb = jnp.maximum(emb, 0.0)                 # (TB, 128)
        emb_ref[...] = emb

        # fcn = nn.Linear(128, 3): head padded to 128 lanes for dense stores.
        out_ref[...] = jnp.dot(emb, w2_ref[...],
                               preferred_element_type=jnp.float32) + b2_ref[...]


def resgcnv2_forward(x_nchw, w1, b1, w2, b2):
    """x_nchw: (B, C, H, W) float32. Returns (out (B, 3), embedding (B, 128))."""
    B, C, H, W = x_nchw.shape
    HW = H * W

    # ---- tile sizes --------------------------------------------------------
    TB = min(128, _round_up(B, 8))                  # batch tile (sublane mult)
    B_pad = _round_up(B, TB)
    THW = 512 if HW >= 512 else _round_up(HW, 128)  # lane-aligned HW tile
    HW_pad = _round_up(HW, THW)

    # ---- operand prep (wrapper-side, cheap) --------------------------------
    # bf16 input halves HBM traffic; zero padding keeps the tiled sum exact.
    x_flat = x_nchw.reshape(B, C, HW).astype(jnp.bfloat16)
    x_flat = jnp.pad(x_flat, ((0, B_pad - B), (0, 0), (0, HW_pad - HW)))

    w1_scaled = (w1 / HW).astype(jnp.float32)       # fold 1/HW into w1
    b1_2d = b1.reshape(1, EMB_DIM).astype(jnp.float32)

    # nn.Linear stores weight as (out, in); transpose + zero-pad to 128 lanes.
    w2_pad = jnp.zeros((EMB_DIM, PAD_OUT), jnp.float32).at[:, :OUT_DIM].set(
        w2.T.astype(jnp.float32))
    b2_pad = jnp.zeros((1, PAD_OUT), jnp.float32).at[:, :OUT_DIM].set(
        b2.astype(jnp.float32))

    grid = (B_pad // TB, HW_pad // THW)

    cost = pl.CostEstimate(
        flops=(B_pad * C * HW_pad                       # pooling adds
               + 2 * B_pad * C * EMB_DIM                # Linear(C, 128)
               + 2 * B_pad * EMB_DIM * PAD_OUT),        # padded head
        transcendentals=0,
        bytes_accessed=(x_flat.size * 2
                        + (w1_scaled.size + w2_pad.size) * 4
                        + (B_pad * PAD_OUT + B_pad * EMB_DIM) * 4),
    )

    out_pad, emb_pad = pl.pallas_call(
        _resgcnv2_kernel,
        out_shape=(
            jax.ShapeDtypeStruct((B_pad, PAD_OUT), jnp.float32),
            jax.ShapeDtypeStruct((B_pad, EMB_DIM), jnp.float32),
        ),
        grid=grid,
        in_specs=[
            # x: tiled over batch and HW -> double-buffered DMA.
            pl.BlockSpec((TB, C, THW), lambda i, k: (i, 0, k)),
            # Weights/biases: same block every grid point -> VMEM-resident.
            pl.BlockSpec((C, EMB_DIM), lambda i, k: (0, 0)),
            pl.BlockSpec((1, EMB_DIM), lambda i, k: (0, 0)),
            pl.BlockSpec((EMB_DIM, PAD_OUT), lambda i, k: (0, 0)),
            pl.BlockSpec((1, PAD_OUT), lambda i, k: (0, 0)),
        ],
        out_specs=(
            # Same block across the reduction axis -> resident accumulator
            # semantics; written only on the last HW step.
            pl.BlockSpec((TB, PAD_OUT), lambda i, k: (i, 0)),
            pl.BlockSpec((TB, EMB_DIM), lambda i, k: (i, 0)),
        ),
        scratch_shapes=[pltpu.VMEM((TB, C), jnp.float32)],
        compiler_params=pltpu.CompilerParams(
            # batch axis parallel (v7x megacore), HW reduction arbitrary.
            dimension_semantics=("parallel", "arbitrary"),
            vmem_limit_bytes=32 * 1024 * 1024,
        ),
        cost_estimate=cost,
    )(x_flat, w1_scaled, b1_2d, w2_pad, b2_pad)

    # Strip batch padding and the lane padding of the 3-wide head.
    return out_pad[:B, :OUT_DIM], emb_pad[:B, :]


def _reference_forward(x_nchw, w1, b1, w2, b2):
    B, C = x_nchw.shape[0], x_nchw.shape[1]
    # Match the kernel's bf16 input cast so the comparison is apples-to-apples.
    xb = x_nchw.reshape(B, C, -1).astype(jnp.bfloat16).astype(jnp.float32)
    pooled = jnp.mean(xb, axis=-1)
    emb = jnp.maximum(pooled @ w1 + b1, 0.0)
    out = emb @ w2.T + b2
    return out, emb


if __name__ == "__main__":
    key = jax.random.PRNGKey(0)
    k_x, k_w1, k_b1, k_w2, k_b2 = jax.random.split(key, 5)

    B, C, H, W = 2, 4, 16, 16
    x = jax.random.normal(k_x, (B, C, H, W), dtype=jnp.float32)

    # Synthetic previous_model params: Linear(C, 128)
    w1 = jax.random.normal(k_w1, (C, EMB_DIM), dtype=jnp.float32) * 0.1
    b1 = jax.random.normal(k_b1, (EMB_DIM,), dtype=jnp.float32) * 0.1
    # fcn = nn.Linear(128, 3): weight (3, 128), bias (3,)
    w2 = jax.random.normal(k_w2, (OUT_DIM, EMB_DIM), dtype=jnp.float32) * 0.1
    b2 = jax.random.normal(k_b2, (OUT_DIM,), dtype=jnp.float32) * 0.1

    out, emb = resgcnv2_forward(x, w1, b1, w2, b2)
    jax.block_until_ready((out, emb))

    ref_out, ref_emb = _reference_forward(x, w1, b1, w2, b2)
    assert out.shape == (B, OUT_DIM) and emb.shape == (B, EMB_DIM)
    assert jnp.allclose(out, ref_out, atol=5e-3, rtol=5e-3)
    assert jnp.allclose(emb, ref_emb, atol=5e-3, rtol=5e-3)

    print("KERNEL_OK")
</pallas_src>

<mosaic_0001>
module attributes {stable_mosaic.version = 11 : i64} {
  func.func @_resgcnv2_kernel(%arg0: i32, %arg1: i32, %arg2: memref<8x4x256xbf16, #tpu.memory_space<vmem>>, %arg3: memref<4x128xf32, #tpu.memory_space<vmem>>, %arg4: memref<1x128xf32, #tpu.memory_space<vmem>>, %arg5: memref<128x128xf32, #tpu.memory_space<vmem>>, %arg6: memref<1x128xf32, #tpu.memory_space<vmem>>, %arg7: memref<8x128xf32, #tpu.memory_space<vmem>>, %arg8: memref<8x128xf32, #tpu.memory_space<vmem>>, %arg9: memref<8x4xf32, #tpu.memory_space<vmem>>) attributes {dimension_semantics = [#tpu.dimension_semantics<parallel>, #tpu.dimension_semantics<arbitrary>], iteration_bounds = array<i64: 1, 1>, scalar_prefetch = 0 : i64, scratch_operands = 1 : i64, tpu.core_type = #tpu.core_type<tc>, window_params = [{transform_indices = @transform_0, window_bounds = array<i64: 8, 4, 256>}, {pipeline_mode = #tpu.pipeline_mode<synchronous>, transform_indices = @transform_1, window_bounds = array<i64: 4, 128>}, {pipeline_mode = #tpu.pipeline_mode<synchronous>, transform_indices = @transform_2, window_bounds = array<i64: 1, 128>}, {pipeline_mode = #tpu.pipeline_mode<synchronous>, transform_indices = @transform_3, window_bounds = array<i64: 128, 128>}, {pipeline_mode = #tpu.pipeline_mode<synchronous>, transform_indices = @transform_4, window_bounds = array<i64: 1, 128>}, {transform_indices = @transform_5, window_bounds = array<i64: 8, 128>}, {transform_indices = @transform_6, window_bounds = array<i64: 8, 128>}]} {
    %c0_i32 = arith.constant 0 : i32
    %0 = arith.cmpi eq, %arg1, %c0_i32 : i32
    %1 = arith.extui %0 : i1 to i32
    %c0_i32_0 = arith.constant 0 : i32
    %2 = arith.cmpi ne, %1, %c0_i32_0 : i32
    scf.if %2 {
      %cst_9 = arith.constant 0.000000e+00 : f32
      %12 = vector.broadcast %cst_9 : f32 to vector<8x4xf32>
      %c0_10 = arith.constant 0 : index
      %c0_11 = arith.constant 0 : index
      %13 = vector.load %arg9[%c0_10, %c0_11] : memref<8x4xf32, #tpu.memory_space<vmem>>, vector<8x4xf32>
      tpu.vector_store %arg9[%c0_10, %c0_11], %12 {strides = array<i32>} : memref<8x4xf32, #tpu.memory_space<vmem>>, vector<8x4xf32>,
    } else {
    }
    %c0 = arith.constant 0 : index
    %c0_1 = arith.constant 0 : index
    %c0_2 = arith.constant 0 : index
    %3 = vector.load %arg2[%c0, %c0_1, %c0_2] : memref<8x4x256xbf16, #tpu.memory_space<vmem>>, vector<8x4x256xbf16>
    %4 = arith.extf %3 : vector<8x4x256xbf16> to vector<8x4x256xf32>
    %c0_3 = arith.constant 0 : index
    %c0_4 = arith.constant 0 : index
    %5 = vector.load %arg9[%c0_3, %c0_4] : memref<8x4xf32, #tpu.memory_space<vmem>>, vector<8x4xf32>
    %cst = arith.constant dense<0.000000e+00> : vector<8x4xf32>
    %6 = vector.multi_reduction <add>, %4, %cst [2] : vector<8x4x256xf32> to vector<8x4xf32>
    %7 = arith.addf %5, %6 : vector<8x4xf32>
    %c0_5 = arith.constant 0 : index
    %c0_6 = arith.constant 0 : index
    %8 = vector.load %arg9[%c0_5, %c0_6] : memref<8x4xf32, #tpu.memory_space<vmem>>, vector<8x4xf32>
    tpu.vector_store %arg9[%c0_5, %c0_6], %7 {strides = array<i32>} : memref<8x4xf32, #tpu.memory_space<vmem>>, vector<8x4xf32>,
    %c0_i32_7 = arith.constant 0 : i32
    %9 = arith.cmpi eq, %arg1, %c0_i32_7 : i32
    %10 = arith.extui %9 : i1 to i32
    %c0_i32_8 = arith.constant 0 : i32
    %11 = arith.cmpi ne, %10, %c0_i32_8 : i32
    scf.if %11 {
      %c0_9 = arith.constant 0 : index
      %c0_10 = arith.constant 0 : index
      %12 = vector.load %arg9[%c0_9, %c0_10] : memref<8x4xf32, #tpu.memory_space<vmem>>, vector<8x4xf32>
      %c0_11 = arith.constant 0 : index
      %c0_12 = arith.constant 0 : index
      %13 = vector.load %arg3[%c0_11, %c0_12] : memref<4x128xf32, #tpu.memory_space<vmem>>, vector<4x128xf32>
      %cst_13 = arith.constant dense<0.000000e+00> : vector<8x128xf32>
      %14 = tpu.matmul %12, %13, %cst_13 {dimension_numbers = #tpu.dot_dimension_numbers<[1], [0], [0], [1], [0, 0, 1, 1], [], []>} : vector<8x4xf32>, vector<4x128xf32>, vector<8x128xf32> -> vector<8x128xf32>
      %c0_14 = arith.constant 0 : index
      %c0_15 = arith.constant 0 : index
      %15 = vector.load %arg4[%c0_14, %c0_15] : memref<1x128xf32, #tpu.memory_space<vmem>>, vector<1x128xf32>
      %16 = vector.broadcast %15 : vector<1x128xf32> to vector<8x128xf32>
      %17 = arith.addf %14, %16 : vector<8x128xf32>
      %cst_16 = arith.constant 0.000000e+00 : f32
      %18 = vector.broadcast %cst_16 : f32 to vector<8x128xf32>
      %19 = arith.maximumf %17, %18 : vector<8x128xf32>
      %c0_17 = arith.constant 0 : index
      %c0_18 = arith.constant 0 : index
      %20 = vector.load %arg8[%c0_17, %c0_18] : memref<8x128xf32, #tpu.memory_space<vmem>>, vector<8x128xf32>
      tpu.vector_store %arg8[%c0_17, %c0_18], %19 {strides = array<i32>} : memref<8x128xf32, #tpu.memory_space<vmem>>, vector<8x128xf32>,
      %c0_19 = arith.constant 0 : index
      %c0_20 = arith.constant 0 : index
      %21 = vector.load %arg5[%c0_19, %c0_20] : memref<128x128xf32, #tpu.memory_space<vmem>>, vector<128x128xf32>
      %cst_21 = arith.constant dense<0.000000e+00> : vector<8x128xf32>
      %22 = tpu.matmul %19, %21, %cst_21 {dimension_numbers = #tpu.dot_dimension_numbers<[1], [0], [0], [1], [0, 0, 1, 1], [], []>} : vector<8x128xf32>, vector<128x128xf32>, vector<8x128xf32> -> vector<8x128xf32>
      %c0_22 = arith.constant 0 : index
      %c0_23 = arith.constant 0 : index
      %23 = vector.load %arg6[%c0_22, %c0_23] : memref<1x128xf32, #tpu.memory_space<vmem>>, vector<1x128xf32>
      %24 = vector.broadcast %23 : vector<1x128xf32> to vector<8x128xf32>
      %25 = arith.addf %22, %24 : vector<8x128xf32>
      %c0_24 = arith.constant 0 : index
      %c0_25 = arith.constant 0 : index
      %26 = vector.load %arg7[%c0_24, %c0_25] : memref<8x128xf32, #tpu.memory_space<vmem>>, vector<8x128xf32>
      tpu.vector_store %arg7[%c0_24, %c0_25], %25 {strides = array<i32>} : memref<8x128xf32, #tpu.memory_space<vmem>>, vector<8x128xf32>,
    } else {
    }
    return
  }
  func.func @transform_0(%arg0: i32, %arg1: i32) -> (i32, i32, i32) {
    %c0_i32 = arith.constant 0 : i32
    %c0_i32_0 = arith.constant 0 : i32
    return %arg0, %c0_i32, %arg1 : i32, i32, i32
  }
  func.func @transform_1(%arg0: i32, %arg1: i32) -> (i32, i32) {
    %c0_i32 = arith.constant 0 : i32
    %c0_i32_0 = arith.constant 0 : i32
    %c0_i32_1 = arith.constant 0 : i32
    return %c0_i32, %c0_i32_0 : i32, i32
  }
  func.func @transform_2(%arg0: i32, %arg1: i32) -> (i32, i32) {
    %c0_i32 = arith.constant 0 : i32
    %c0_i32_0 = arith.constant 0 : i32
    %c0_i32_1 = arith.constant 0 : i32
    return %c0_i32, %c0_i32_0 : i32, i32
  }
  func.func @transform_3(%arg0: i32, %arg1: i32) -> (i32, i32) {
    %c0_i32 = arith.constant 0 : i32
    %c0_i32_0 = arith.constant 0 : i32
    %c0_i32_1 = arith.constant 0 : i32
    return %c0_i32, %c0_i32_0 : i32, i32
  }
  func.func @transform_4(%arg0: i32, %arg1: i32) -> (i32, i32) {
    %c0_i32 = arith.constant 0 : i32
    %c0_i32_0 = arith.constant 0 : i32
    %c0_i32_1 = arith.constant 0 : i32
    return %c0_i32, %c0_i32_0 : i32, i32
  }
  func.func @transform_5(%arg0: i32, %arg1: i32) -> (i32, i32) {
    %c0_i32 = arith.constant 0 : i32
    %c0_i32_0 = arith.constant 0 : i32
    return %arg0, %c0_i32 : i32, i32
  }
  func.func @transform_6(%arg0: i32, %arg1: i32) -> (i32, i32) {
    %c0_i32 = arith.constant 0 : i32
    %c0_i32_0 = arith.constant 0 : i32
    return %arg0, %c0_i32 : i32, i32
  }
}

</mosaic_0001>

<llo_original>
// kernel: tpu_custom_call.1
$region0: #{tpu_custom_call.1}
  #allocation0 [shape = 'u32[]', space=smem, size = 0x4, offset = 0x4, fixed_abs, tag = 'smem constant byte address 0x4 - core index']
  #allocation1 [shape = 'u32[144,128]{1,0:T(1,128)}', space=vmem, size = 0x12000, scoped, tag = 'internal scratch']
  #allocation2 [shape = 'f32[8,4]{1,0:T(8,128)}', space=vmem, size = 0x1000, scoped, tag = 'scratch operand']
  %s0 = inlined_call_operand.hbm [shape: bf16[8,4,256], index: 0, kind: input, shape index: {}]
  %s1 = inlined_call_operand.hbm [shape: f32[4,128], index: 1, kind: input, shape index: {}]
  %s2 = inlined_call_operand.vmem [shape: f32[1,128], index: 2, kind: input, shape index: {}]
  %s3 = inlined_call_operand.hbm [shape: f32[128,128], index: 3, kind: input, shape index: {}]
  %s4 = inlined_call_operand.vmem [shape: f32[1,128], index: 4, kind: input, shape index: {}]
  %s5 = inlined_call_operand.hbm [shape: f32[8,128], index: 5, kind: output, shape index: {0}]
  %s6 = inlined_call_operand.hbm [shape: f32[8,128], index: 6, kind: output, shape index: {1}]
  %7 = xla_tuple %s5, %s6
  %s8 = sld [smem:[#allocation0]]
  $region58: #{tpu_custom_call.1} parent=0
    _
  %s10 = ssub.s32 1, %s8
  %s11 = scalar_select 0, %s10, %s8
  $region1: #{tpu_custom_call.1} parent=0
    #allocation3 [shape = 'u8[16384]{0}', space=vmem, size = 0x4000, scoped, tag = 'input window, operand 0, single buffered']
    #allocation4 [shape = 's32[1]{0}', space=sflag, size = 0x4, scoped, tag = 'scoped memory for tpu_custom_call.1']
    #allocation5 [shape = 's32[1]{0}', space=sflag, size = 0x4, scoped, tag = 'scoped memory for tpu_custom_call.1']
    #allocation6 [shape = 'u8[2048]{0}', space=vmem, size = 0x800, scoped, tag = 'input window, operand 1, single buffered']
    #allocation7 [shape = 's32[1]{0}', space=sflag, size = 0x4, scoped, tag = 'scoped memory for tpu_custom_call.1']
    #allocation8 [shape = 'u8[65536]{0}', space=vmem, size = 0x10000, scoped, tag = 'input window, operand 3, single buffered']
    #allocation9 [shape = 'u8[4096]{0}', space=vmem, size = 0x1000, scoped, tag = 'output window, operand 0, single buffered']
    #allocation10 [shape = 'u8[4096]{0}', space=vmem, size = 0x1000, scoped, tag = 'output window, operand 1, single buffered']
    #allocation11 [shape = 's32[1]{0}', space=sflag, size = 0x4, scoped, tag = 'scoped memory for tpu_custom_call.1']
    %12 = vsyncpa [#allocation4], 0
    %13 = vsyncpa [#allocation7], 0
    %14 = vsyncpa [#allocation5], 0
    %15 = vsyncpa [#allocation11], 0
    // Predicated region
    $region2: #{tpu_custom_call.1} parent=1 // pred_check
      _
    $region3: #{tpu_custom_call.1} parent=1 // pred_check_branch
      %17 = sbr.rel (0) target = $region5
    $region4: #{tpu_custom_call.1} parent=1 // pred_region
      %s19 = ssub.s32 512, 512
      %20 = vsyncadd [#allocation4], %s19
      %s21 = sshll.u32 [#allocation3], 4
      %s22 = int_to_ptr.vmem [resolvable:$true] %s21
      %27 = dma.hbm_to_vmem [thread:$0]  %s0, 512, %s22, [#allocation4], 64, 64, 4
    $region5: #{tpu_custom_call.1} parent=1 // pred_fallthru
      _
    // Predicated region
    $region6: #{tpu_custom_call.1} parent=1 // pred_check
      _
    $region7: #{tpu_custom_call.1} parent=1 // pred_check_branch
      %29 = sbr.rel (0) target = $region9
    $region8: #{tpu_custom_call.1} parent=1 // pred_region
      %s31 = ssub.s32 64, 64
      %32 = vsyncadd [#allocation7], %s31
      %s34 = sshll.u32 [#allocation6], 4
      %s35 = int_to_ptr.vmem [resolvable:$true] %s34
      %37 = dma.hbm_to_vmem [thread:$0]  %s1, 64, %s35, [#allocation7]
    $region9: #{tpu_custom_call.1} parent=1 // pred_fallthru
      _
    // Predicated region
    $region10: #{tpu_custom_call.1} parent=1 // pred_check
      _
    $region11: #{tpu_custom_call.1} parent=1 // pred_check_branch
      %39 = sbr.rel (0) target = $region13
    $region12: #{tpu_custom_call.1} parent=1 // pred_region
      _
    $region13: #{tpu_custom_call.1} parent=1 // pred_fallthru
      _
    // Predicated region
    $region14: #{tpu_custom_call.1} parent=1 // pred_check
      _
    $region15: #{tpu_custom_call.1} parent=1 // pred_check_branch
      %41 = sbr.rel (0) target = $region17
    $region16: #{tpu_custom_call.1} parent=1 // pred_region
      %s43 = ssub.s32 2048, 2048
      %44 = vsyncadd [#allocation7], %s43
      %s45 = sshll.u32 [#allocation8], 4
      %s46 = int_to_ptr.vmem [resolvable:$true] %s45
      %51 = dma.hbm_to_vmem [thread:$0]  %s3, 2048, %s46, [#allocation7], 128, 128, 8
    $region17: #{tpu_custom_call.1} parent=1 // pred_fallthru
      _
    // Predicated region
    $region18: #{tpu_custom_call.1} parent=1 // pred_check
      _
    $region19: #{tpu_custom_call.1} parent=1 // pred_check_branch
      %53 = sbr.rel (0) target = $region21
    $region20: #{tpu_custom_call.1} parent=1 // pred_region
      _
    $region21: #{tpu_custom_call.1} parent=1 // pred_fallthru
      _
    // Predicated region
    $region22: #{tpu_custom_call.1} parent=1 // pred_check
      _
    $region23: #{tpu_custom_call.1} parent=1 // pred_check_branch
      %55 = sbr.rel (0) target = $region25
    $region24: #{tpu_custom_call.1} parent=1 // pred_region
      %56 = dma.done [#allocation4], 512
    $region25: #{tpu_custom_call.1} parent=1 // pred_fallthru
      _
    // Predicated region
    $region26: #{tpu_custom_call.1} parent=1 // pred_check
      _
    $region27: #{tpu_custom_call.1} parent=1 // pred_check_branch
      %58 = sbr.rel (0) target = $region29
    $region28: #{tpu_custom_call.1} parent=1 // pred_region
      %59 = dma.done [#allocation7], 64
    $region29: #{tpu_custom_call.1} parent=1 // pred_fallthru
      _
    // Predicated region
    $region30: #{tpu_custom_call.1} parent=1 // pred_check
      _
    $region31: #{tpu_custom_call.1} parent=1 // pred_check_branch
      %61 = sbr.rel (0) target = $region33
    $region32: #{tpu_custom_call.1} parent=1 // pred_region
      %62 = dma.done [#allocation7], 2048
    $region33: #{tpu_custom_call.1} parent=1 // pred_fallthru
      _
    %p63 = scmp.eq.s32.totalorder 0, 0
    // Predicated region
    $region34: #{tpu_custom_call.1} parent=1 // pred_check
      %p64 = pneg %p63
    $region35: #{tpu_custom_call.1} parent=1 // pred_check_branch
      %66 = sbr.rel (%p64) target = $region37
    $region36: #{tpu_custom_call.1} parent=1 // pred_region
      %vm67 = vcmask 31744
      %68 = vst.msk [vmem:[#allocation2] sm:$0xff] %vm67, 0.0
    $region37: #{tpu_custom_call.1} parent=1 // pred_fallthru
      _
    %v69 = vld [vmem:[#allocation3] sm:$0xf]
    %v70 = vld [vmem:[#allocation3 + $0x4] sm:$0xf]
    %v71 = vld [vmem:[#allocation3 + $0x8] sm:$0xf]
    %v72 = vld [vmem:[#allocation3 + $0xc] sm:$0xf]
    %v73 = vld [vmem:[#allocation3 + $0x10] sm:$0xf]
    %v74 = vld [vmem:[#allocation3 + $0x14] sm:$0xf]
    %v75 = vld [vmem:[#allocation3 + $0x18] sm:$0xf]
    %v76 = vld [vmem:[#allocation3 + $0x1c] sm:$0xf]
    %v77 = vunpack.c.l.bf16 %v69
    %v78 = vunpack.c.l.bf16 %v70
    %v79 = vunpack.c.l.bf16 %v71
    %v80 = vunpack.c.l.bf16 %v72
    %v81 = vunpack.c.l.bf16 %v73
    %v82 = vunpack.c.l.bf16 %v74
    %v83 = vunpack.c.l.bf16 %v75
    %v84 = vunpack.c.l.bf16 %v76
    %v85 = vld [vmem:[#allocation2] sm:$0xff]
    %v94 = vcombine.high %v77, %v77
    %v95 = vcombine.high %v78, %v78
    %v96 = vcombine.high %v79, %v79
    %v97 = vcombine.high %v80, %v80
    %v98 = vcombine.high %v81, %v81
    %v99 = vcombine.high %v82, %v82
    %v100 = vcombine.high %v83, %v83
    %v101 = vcombine.high %v84, %v84
    %vm110 = vcmask 1043456
    %v111 = vsel %vm110, %v77, 0.0
    %v112 = vsel %vm110, %v94, 0.0
    %v113 = vadd.f32 %v111, %v112
    %114 = vadd.xlane.f32.xlu0 %v113
    %v115 = vpop.xlane.xlu0 %114
    %v116 = vsel %vm110, %v78, 0.0
    %v117 = vsel %vm110, %v95, 0.0
    %v118 = vadd.f32 %v116, %v117
    %119 = vadd.xlane.f32.xlu0 %v118
    %v120 = vpop.xlane.xlu0 %119
    %v121 = vsel %vm110, %v79, 0.0
    %v122 = vsel %vm110, %v96, 0.0
    %v123 = vadd.f32 %v121, %v122
    %124 = vadd.xlane.f32.xlu0 %v123
    %v125 = vpop.xlane.xlu0 %124
    %v126 = vsel %vm110, %v80, 0.0
    %v127 = vsel %vm110, %v97, 0.0
    %v128 = vadd.f32 %v126, %v127
    %129 = vadd.xlane.f32.xlu0 %v128
    %v130 = vpop.xlane.xlu0 %129
    %v131 = vsel %vm110, %v81, 0.0
    %v132 = vsel %vm110, %v98, 0.0
    %v133 = vadd.f32 %v131, %v132
    %134 = vadd.xlane.f32.xlu0 %v133
    %v135 = vpop.xlane.xlu0 %134
    %v136 = vsel %vm110, %v82, 0.0
    %v137 = vsel %vm110, %v99, 0.0
    %v138 = vadd.f32 %v136, %v137
    %139 = vadd.xlane.f32.xlu0 %v138
    %v140 = vpop.xlane.xlu0 %139
    %v141 = vsel %vm110, %v83, 0.0
    %v142 = vsel %vm110, %v100, 0.0
    %v143 = vadd.f32 %v141, %v142
    %144 = vadd.xlane.f32.xlu0 %v143
    %v145 = vpop.xlane.xlu0 %144
    %v146 = vsel %vm110, %v84, 0.0
    %v147 = vsel %vm110, %v101, 0.0
    %v148 = vadd.f32 %v146, %v147
    %149 = vadd.xlane.f32.xlu0 %v148
    %v150 = vpop.xlane.xlu0 %149
    %v159 = vlaneseq
    %v160 = vand.u32 %v159, 127
    %v161 = vlaneseq
    %v162 = vshrl.u32 %v161, 7
    %v163 = vsub.s32 %v160, %v162
    %v164 = vrot.slane %v115, %v163
    %v165 = vlaneseq
    %v166 = vshrl.u32 %v165, 7
    %v167 = vsub.s32 %v160, %v166
    %v168 = vrot.slane %v120, %v167
    %v169 = vlaneseq
    %v170 = vshrl.u32 %v169, 7
    %v171 = vsub.s32 %v160, %v170
    %v172 = vrot.slane %v125, %v171
    %v173 = vlaneseq
    %v174 = vshrl.u32 %v173, 7
    %v175 = vsub.s32 %v160, %v174
    %v176 = vrot.slane %v130, %v175
    %v177 = vlaneseq
    %v178 = vshrl.u32 %v177, 7
    %v179 = vsub.s32 %v160, %v178
    %v180 = vrot.slane %v135, %v179
    %v181 = vlaneseq
    %v182 = vshrl.u32 %v181, 7
    %v183 = vsub.s32 %v160, %v182
    %v184 = vrot.slane %v140, %v183
    %v185 = vlaneseq
    %v186 = vshrl.u32 %v185, 7
    %v187 = vsub.s32 %v160, %v186
    %v188 = vrot.slane %v145, %v187
    %v189 = vlaneseq
    %v190 = vshrl.u32 %v189, 7
    %v191 = vsub.s32 %v160, %v190
    %v192 = vrot.slane %v150, %v191
    %vm193 = vcmask 1041409
    %v194 = vsel %vm193, %v168, %v164
    %vm195 = vcmask 1042434
    %v196 = vsel %vm195, %v172, %v194
    %vm197 = vcmask 1043459
    %v198 = vsel %vm197, %v176, %v196
    %vm199 = vcmask 1044484
    %v200 = vsel %vm199, %v180, %v198
    %vm201 = vcmask 1045509
    %v202 = vsel %vm201, %v184, %v200
    %vm203 = vcmask 1046534
    %v204 = vsel %vm203, %v188, %v202
    %vm205 = vcmask 1047559
    %v206 = vsel %vm205, %v192, %v204
    %v208 = vadd.f32 %v85, %v206
    %vm209 = vcmask 31744
    %210 = vst.msk [vmem:[#allocation2] sm:$0xff] %vm209, %v208
    // Predicated region
    $region38: #{tpu_custom_call.1} parent=1 // pred_check
      %p211 = pneg %p63
    $region39: #{tpu_custom_call.1} parent=1 // pred_check_branch
      %213 = sbr.rel (%p211) target = $region41
    $region40: #{tpu_custom_call.1} parent=1 // pred_region
      %v214 = vld [vmem:[#allocation2] sm:$0xff]
      %v215 = vld [vmem:[#allocation6] sm:$0xf]
      %v216 = vld [vmem:[%s2] sm:$0x1]
      %v218 = vlaneseq
      %v219 = vshrl.u32 %v218, 7
      %v220 = vsub.s32 0, %v219
      %v221 = vrot.slane %v216, %v220
      %v224 = vsel %vm209, %v214, 0
      %v227 = vsel %vm110, %v215, 0
      %229 = vmatprep.subr.mxu0 0.0
      %230 = vmatpush1.msra.mxu0 0.0
      %231 = vmatprep.subr.mxu0 0.0
      %232 = vmatpush1.msra.mxu0 0.0
      %233 = vmatprep.subr.mxu0 0.0
      %234 = vmatpush1.msra.mxu0 0.0
      %235 = vmatprep.subr.mxu0 0.0
      %236 = vmatpush1.msra.mxu0 0.0
      %237 = vmatprep.subr.mxu0 0.0
      %238 = vmatpush1.msra.mxu0 0.0
      %239 = vmatprep.subr.mxu0 0.0
      %240 = vmatpush1.msra.mxu0 0.0
      %241 = vmatprep.subr.mxu0 0.0
      %242 = vmatpush1.msra.mxu0 0.0
      %243 = vmatprep.subr.mxu0 0.0
      %244 = vmatpush1.msra.mxu0 0.0
      %245 = vmatprep.subr.mxu0 0.0
      %246 = vmatpush1.msra.mxu0 0.0
      %247 = vmatprep.subr.mxu0 0.0
      %248 = vmatpush1.msra.mxu0 0.0
      %249 = vmatprep.subr.mxu0 0.0
      %250 = vmatpush1.msra.mxu0 0.0
      %251 = vmatprep.subr.mxu0 0.0
      %252 = vmatpush1.msra.mxu0 0.0
      %253 = vmatprep.subr.mxu0 0.0
      %254 = vmatpush1.msra.mxu0 0.0
      %255 = vmatprep.subr.mxu0 0.0
      %256 = vmatpush1.msra.mxu0 0.0
      %257 = vmatprep.subr.mxu0 0.0
      %258 = vmatpush1.msra.mxu0 0.0
      %259 = vmatprep.subr.mxu0 0.0
      %260 = vmatpush1.msra.mxu0 %v227
      %261 = vmatprep.subr.mxu0 0.0
      %262 = vmatpush2.msra.mxu0 0.0
      %263 = vmatprep.subr.mxu0 0.0
      %264 = vmatpush2.msra.mxu0 0.0
      %265 = vmatprep.subr.mxu0 0.0
      %266 = vmatpush2.msra.mxu0 0.0
      %267 = vmatprep.subr.mxu0 0.0
      %268 = vmatpush2.msra.mxu0 0.0
      %269 = vmatprep.subr.mxu0 0.0
      %270 = vmatpush2.msra.mxu0 0.0
      %271 = vmatprep.subr.mxu0 0.0
      %272 = vmatpush2.msra.mxu0 0.0
      %273 = vmatprep.subr.mxu0 0.0
      %274 = vmatpush2.msra.mxu0 0.0
      %275 = vmatprep.subr.mxu0 0.0
      %276 = vmatpush2.msra.mxu0 0.0
      %277 = vmatprep.subr.mxu0 0.0
      %278 = vmatpush2.msra.mxu0 0.0
      %279 = vmatprep.subr.mxu0 0.0
      %280 = vmatpush2.msra.mxu0 0.0
      %281 = vmatprep.subr.mxu0 0.0
      %282 = vmatpush2.msra.mxu0 0.0
      %283 = vmatprep.subr.mxu0 0.0
      %284 = vmatpush2.msra.mxu0 0.0
      %285 = vmatprep.subr.mxu0 0.0
      %286 = vmatpush2.msra.mxu0 0.0
      %287 = vmatprep.subr.mxu0 0.0
      %288 = vmatpush2.msra.mxu0 0.0
      %289 = vmatprep.subr.mxu0 0.0
      %290 = vmatpush2.msra.mxu0 0.0
      %291 = vmatprep.subr.mxu0 0.0
      %292 = vmatpush2.msra.mxu0 0.0
      %293 = vmatprep.mubr.f32.mxu0 0.0
      %294 = vmatmul.mubr.f32.gmra.mxu0 %v224
      %v295 = vpop.f32.mrf.mxu0
      %v296 = vadd.f32 %v221, %v295
      %v297 = vpop.f32.mrf.mxu0
      %298 = vdwg.mxu0
      %v299 = vmax.f32 %v296, 0.0
      %300 = vst [vmem:[#allocation10] sm:$0xff] %v299
      %v301 = vld [vmem:[#allocation8] sm:$0xff]
      %v302 = vld [vmem:[#allocation8 + $0x8] sm:$0xff]
      %v303 = vld [vmem:[#allocation8 + $0x10] sm:$0xff]
      %v304 = vld [vmem:[#allocation8 + $0x18] sm:$0xff]
      %v305 = vld [vmem:[#allocation8 + $0x20] sm:$0xff]
      %v306 = vld [vmem:[#allocation8 + $0x28] sm:$0xff]
      %v307 = vld [vmem:[#allocation8 + $0x30] sm:$0xff]
      %v308 = vld [vmem:[#allocation8 + $0x38] sm:$0xff]
      %v309 = vld [vmem:[#allocation8 + $0x40] sm:$0xff]
      %v310 = vld [vmem:[#allocation8 + $0x48] sm:$0xff]
      %v311 = vld [vmem:[#allocation8 + $0x50] sm:$0xff]
      %v312 = vld [vmem:[#allocation8 + $0x58] sm:$0xff]
      %v313 = vld [vmem:[#allocation8 + $0x60] sm:$0xff]
      %v314 = vld [vmem:[#allocation8 + $0x68] sm:$0xff]
      %v315 = vld [vmem:[#allocation8 + $0x70] sm:$0xff]
      %v316 = vld [vmem:[#allocation8 + $0x78] sm:$0xff]
      %v317 = vld [vmem:[%s4] sm:$0x1]
      %v319 = vlaneseq
      %v320 = vshrl.u32 %v319, 7
      %v321 = vsub.s32 0, %v320
      %v322 = vrot.slane %v317, %v321
      %324 = vmatprep.subr.mxu0 0.0
      %325 = vmatpush1.msra.mxu0 %v316
      %326 = vmatprep.subr.mxu0 0.0
      %327 = vmatpush1.msra.mxu0 %v315
      %328 = vmatprep.subr.mxu0 0.0
      %329 = vmatpush1.msra.mxu0 %v314
      %330 = vmatprep.subr.mxu0 0.0
      %331 = vmatpush1.msra.mxu0 %v313
      %332 = vmatprep.subr.mxu0 0.0
      %333 = vmatpush1.msra.mxu0 %v312
      %334 = vmatprep.subr.mxu0 0.0
      %335 = vmatpush1.msra.mxu0 %v311
      %336 = vmatprep.subr.mxu0 0.0
      %337 = vmatpush1.msra.mxu0 %v310
      %338 = vmatprep.subr.mxu0 0.0
      %339 = vmatpush1.msra.mxu0 %v309
      %340 = vmatprep.subr.mxu0 0.0
      %341 = vmatpush1.msra.mxu0 %v308
      %342 = vmatprep.subr.mxu0 0.0
      %343 = vmatpush1.msra.mxu0 %v307
      %344 = vmatprep.subr.mxu0 0.0
      %345 = vmatpush1.msra.mxu0 %v306
      %346 = vmatprep.subr.mxu0 0.0
      %347 = vmatpush1.msra.mxu0 %v305
      %348 = vmatprep.subr.mxu0 0.0
      %349 = vmatpush1.msra.mxu0 %v304
      %350 = vmatprep.subr.mxu0 0.0
      %351 = vmatpush1.msra.mxu0 %v303
      %352 = vmatprep.subr.mxu0 0.0
      %353 = vmatpush1.msra.mxu0 %v302
      %354 = vmatprep.subr.mxu0 0.0
      %355 = vmatpush1.msra.mxu0 %v301
      %356 = vmatprep.subr.mxu0 0.0
      %357 = vmatpush2.msra.mxu0 0.0
      %358 = vmatprep.subr.mxu0 0.0
      %359 = vmatpush2.msra.mxu0 0.0
      %360 = vmatprep.subr.mxu0 0.0
      %361 = vmatpush2.msra.mxu0 0.0
      %362 = vmatprep.subr.mxu0 0.0
      %363 = vmatpush2.msra.mxu0 0.0
      %364 = vmatprep.subr.mxu0 0.0
      %365 = vmatpush2.msra.mxu0 0.0
      %366 = vmatprep.subr.mxu0 0.0
      %367 = vmatpush2.msra.mxu0 0.0
      %368 = vmatprep.subr.mxu0 0.0
      %369 = vmatpush2.msra.mxu0 0.0
      %370 = vmatprep.subr.mxu0 0.0
      %371 = vmatpush2.msra.mxu0 0.0
      %372 = vmatprep.subr.mxu0 0.0
      %373 = vmatpush2.msra.mxu0 0.0
      %374 = vmatprep.subr.mxu0 0.0
      %375 = vmatpush2.msra.mxu0 0.0
      %376 = vmatprep.subr.mxu0 0.0
      %377 = vmatpush2.msra.mxu0 0.0
      %378 = vmatprep.subr.mxu0 0.0
      %379 = vmatpush2.msra.mxu0 0.0
      %380 = vmatprep.subr.mxu0 0.0
      %381 = vmatpush2.msra.mxu0 0.0
      %382 = vmatprep.subr.mxu0 0.0
      %383 = vmatpush2.msra.mxu0 0.0
      %384 = vmatprep.subr.mxu0 0.0
      %385 = vmatpush2.msra.mxu0 0.0
      %386 = vmatprep.subr.mxu0 0.0
      %387 = vmatpush2.msra.mxu0 0.0
      %388 = vmatprep.mubr.f32.mxu0 0.0
      %389 = vmatmul.mubr.f32.gmra.mxu0 %v299
      %v390 = vpop.f32.mrf.mxu0
      %v391 = vadd.f32 %v322, %v390
      %v392 = vpop.f32.mrf.mxu0
      %393 = vdwg.mxu0
      %394 = vst [vmem:[#allocation9] sm:$0xff] %v391
    $region41: #{tpu_custom_call.1} parent=1 // pred_fallthru
      _
    // Predicated region
    $region42: #{tpu_custom_call.1} parent=1 // pred_check
      _
    $region43: #{tpu_custom_call.1} parent=1 // pred_check_branch
      %396 = sbr.rel (0) target = $region45
    $region44: #{tpu_custom_call.1} parent=1 // pred_region
      %s398 = ssub.s32 128, 128
      %399 = vsyncadd [#allocation5], %s398
      %s401 = sshll.u32 [#allocation9], 4
      %s402 = int_to_ptr.vmem [resolvable:$true] %s401
      %404 = dma.vmem_to_hbm [thread:$0]  %s402, 128, %s5, [#allocation5]
    $region45: #{tpu_custom_call.1} parent=1 // pred_fallthru
      _
    // Predicated region
    $region46: #{tpu_custom_call.1} parent=1 // pred_check
      _
    $region47: #{tpu_custom_call.1} parent=1 // pred_check_branch
      %406 = sbr.rel (0) target = $region49
    $region48: #{tpu_custom_call.1} parent=1 // pred_region
      %s408 = ssub.s32 128, 128
      %409 = vsyncadd [#allocation11], %s408
      %s411 = sshll.u32 [#allocation10], 4
      %s412 = int_to_ptr.vmem [resolvable:$true] %s411
      %414 = dma.vmem_to_hbm [thread:$0]  %s412, 128, %s6, [#allocation11]
    $region49: #{tpu_custom_call.1} parent=1 // pred_fallthru
      _
    // Predicated region
    $region50: #{tpu_custom_call.1} parent=1 // pred_check
      _
    $region51: #{tpu_custom_call.1} parent=1 // pred_check_branch
      %416 = sbr.rel (0) target = $region53
    $region52: #{tpu_custom_call.1} parent=1 // pred_region
      %417 = dma.done [#allocation5], 128
    $region53: #{tpu_custom_call.1} parent=1 // pred_fallthru
      _
    // Predicated region
    $region54: #{tpu_custom_call.1} parent=1 // pred_check
      _
    $region55: #{tpu_custom_call.1} parent=1 // pred_check_branch
      %419 = sbr.rel (0) target = $region57
    $region56: #{tpu_custom_call.1} parent=1 // pred_region
      %420 = dma.done [#allocation11], 128
    $region57: #{tpu_custom_call.1} parent=1 // pred_fallthru
      _
    %421 = vsyncpa [#allocation4], 1
    %422 = vsyncpa [#allocation7], 1
    %423 = vsyncpa [#allocation5], 1
    %424 = vsyncpa [#allocation11], 1

</llo_original>
